<compile_context>
chip_gen: v7x
topology: tpu7x:2x2x1
jax: 0.10.0
libtpu: 0.0.40
codegen_flags: <defaults>
</compile_context>

<pallas_src>
import functools

import jax
import jax.numpy as jnp
from jax.experimental import pallas as pl
from jax.experimental.pallas import tpu as pltpu


def _shift_zero(a, s, axis):
    """result[i] = a[i + s] along `axis`, zero-filled out of range (static s)."""
    if s == 0:
        return a
    zshape = list(a.shape)
    zshape[axis] = abs(s)
    z = jnp.zeros(zshape, a.dtype)
    idx = [slice(None)] * a.ndim
    if s > 0:
        idx[axis] = slice(s, None)
        return jnp.concatenate([a[tuple(idx)], z], axis=axis)
    idx[axis] = slice(None, s)
    return jnp.concatenate([z, a[tuple(idx)]], axis=axis)


def _dropblock_mask_kernel(u_ref, keep_ref, *, gamma, cbs):
    """Per-tile: bernoulli(gamma) seed mask -> separable max-pool -> keep mask."""
    pad = cbs // 2
    bm = (u_ref[...] < gamma).astype(jnp.float32)

    # max_pool2d(kernel=cbs, stride=1, padding=cbs//2) done separably.
    # Zero fill is exact for a 0/1 mask (padding never increases the max).
    pooled_h = bm
    for off in range(-pad, cbs - pad):          # offsets along H (axis 0)
        if off != 0:
            pooled_h = jnp.maximum(pooled_h, _shift_zero(bm, off, 0))
    pooled = pooled_h
    for off in range(-pad, cbs - pad):          # offsets along W (axis 1)
        if off != 0:
            pooled = jnp.maximum(pooled, _shift_zero(pooled_h, off, 1))

    keep_ref[...] = (1.0 - pooled).astype(keep_ref.dtype)


def _dropblock_apply_kernel(x_ref, keep_ref, scale_ref, o_ref):
    """Per-tile: out = x * keep_mask * normalize_scale."""
    scale = scale_ref[0, 0]
    o_ref[...] = (x_ref[...].astype(jnp.float32)
                  * keep_ref[...].astype(jnp.float32)
                  * scale).astype(o_ref.dtype)


def _choose_bc_tile(bc, h, w, bytes_per_elem=4, budget=2 * 1024 * 1024):
    """Largest B*C tile (multiple of 128 when tiling) with <= `budget` bytes/block."""
    cap = max(1, budget // (h * w * bytes_per_elem))
    if bc <= cap:
        return bc
    t = (cap // 128) * 128
    while t >= 128:
        if bc % t == 0:
            return t
        t -= 128
    return bc  # no aligned divisor found -> single block along B*C


def drop_block_fast_2d_pallas(x, seed, drop_prob=0.1, block_size=7,
                              gamma_scale=1.0):
    B, C, H, W = x.shape
    BC = B * C
    total_size = H * W
    cbs = min(block_size, min(W, H))

    denom = (W - block_size + 1) * (H - block_size + 1)
    if denom <= 0:
        denom = 1  # guard: reference divides by <=0 when H/W < block_size
    gamma = float(min(max(gamma_scale * drop_prob * total_size
                          / (cbs ** 2) / denom, 0.0), 1.0))

    bc_tile = _choose_bc_tile(BC, H, W)
    grid = (BC // bc_tile,)
    cparams = pltpu.CompilerParams(dimension_semantics=("parallel",),
                                   vmem_limit_bytes=32 * 1024 * 1024)

    # lane-dense layout: (B*C, H, W) -> (H, W, B*C)
    xt = jnp.transpose(x.reshape(BC, H, W), (1, 2, 0))

    # uniform randoms generated host-side of the kernel (portable, per-element
    # independent regardless of tiling).
    key = jax.random.PRNGKey(seed)
    u = jax.random.uniform(key, (H, W, BC), dtype=jnp.float32)

    tile_spec = pl.BlockSpec((H, W, bc_tile), lambda i: (0, 0, i))

    # ---- pass 1: bernoulli mask + separable max-pool -> keep mask ----------
    keep = pl.pallas_call(
        functools.partial(_dropblock_mask_kernel, gamma=gamma, cbs=cbs),
        out_shape=jax.ShapeDtypeStruct((H, W, BC), x.dtype),
        grid=grid,
        in_specs=[tile_spec],
        out_specs=tile_spec,
        compiler_params=cparams,
    )(u)

    # global-sum normalization (f32 accumulation, matches reference)
    numel = float(BC * H * W)
    scale = numel / (jnp.sum(keep.astype(jnp.float32)) + 1e-7)
    scale_arr = jnp.reshape(scale, (1, 1)).astype(jnp.float32)

    # ---- pass 2: apply x * keep * scale -------------------------------------
    out_t = pl.pallas_call(
        _dropblock_apply_kernel,
        out_shape=jax.ShapeDtypeStruct((H, W, BC), x.dtype),
        grid=grid,
        in_specs=[tile_spec,
                  tile_spec,
                  pl.BlockSpec((1, 1), lambda i: (0, 0))],
        out_specs=tile_spec,
        compiler_params=cparams,
    )(xt, keep, scale_arr)

    return jnp.transpose(out_t, (2, 0, 1)).reshape(B, C, H, W)


class DropBlock2d:
    """JAX/Pallas port of TCFormer's DropBlock2d (default fast=True path)."""

    def __init__(self, drop_prob=0.1, block_size=7, gamma_scale=1.0,
                 with_noise=False, inplace=False, batchwise=False, fast=True):
        self.drop_prob = drop_prob
        self.block_size = block_size
        self.gamma_scale = gamma_scale
        self.with_noise = with_noise
        self.inplace = inplace
        self.batchwise = batchwise
        self.fast = fast

    def __call__(self, x, *, seed=0, training=True):
        if not training or not self.drop_prob:
            return x
        if not self.fast or self.with_noise or self.batchwise:
            # TODO(synk): slow drop_block_2d / with_noise / batchwise variants not ported.
            raise NotImplementedError(
                "Only fast, noiseless, per-sample DropBlock is ported.")
        return drop_block_fast_2d_pallas(
            x, seed, self.drop_prob, self.block_size, self.gamma_scale)


if __name__ == "__main__":
    key = jax.random.PRNGKey(0)
    x = jax.random.normal(key, (2, 4, 16, 16), dtype=jnp.float32)

    mod = DropBlock2d(drop_prob=0.1, block_size=7)

    y = mod(x, seed=0, training=True)
    y = jax.block_until_ready(y)
    assert y.shape == x.shape and y.dtype == x.dtype

    # retained elements are a positive rescale of the input, dropped ones are 0
    ratio = jnp.where(x != 0, y / x, 0.0)
    assert bool(jnp.all((ratio >= 0.0) | (jnp.abs(y) < 1e-6)))

    # eval mode is identity
    y_eval = jax.block_until_ready(mod(x, seed=0, training=False))
    assert bool(jnp.all(y_eval == x))

    print("KERNEL_OK")
</pallas_src>

<mosaic_0001>
module attributes {stable_mosaic.version = 11 : i64} {
  func.func @_dropblock_mask_kernel(%arg0: i32, %arg1: memref<16x16x8xf32, #tpu.memory_space<vmem>>, %arg2: memref<16x16x8xf32, #tpu.memory_space<vmem>>) attributes {dimension_semantics = [#tpu.dimension_semantics<parallel>], iteration_bounds = array<i64: 1>, scalar_prefetch = 0 : i64, scratch_operands = 0 : i64, tpu.core_type = #tpu.core_type<tc>, window_params = [{transform_indices = @transform_0, window_bounds = array<i64: 16, 16, 8>}, {transform_indices = @transform_1, window_bounds = array<i64: 16, 16, 8>}]} {
    %c0 = arith.constant 0 : index
    %c0_0 = arith.constant 0 : index
    %c0_1 = arith.constant 0 : index
    %0 = vector.load %arg1[%c0, %c0_0, %c0_1] : memref<16x16x8xf32, #tpu.memory_space<vmem>>, vector<16x16x8xf32>
    %cst = arith.constant 0.00522448961 : f32
    %1 = vector.broadcast %cst : f32 to vector<16x16x8xf32>
    %2 = arith.cmpf olt, %0, %1 : vector<16x16x8xf32>
    %3 = arith.extui %2 : vector<16x16x8xi1> to vector<16x16x8xi32>
    %4 = arith.sitofp %3 : vector<16x16x8xi32> to vector<16x16x8xf32>
    %cst_2 = arith.constant 0.000000e+00 : f32
    %5 = vector.broadcast %cst_2 : f32 to vector<3x16x8xf32>
    %6 = vector.extract_strided_slice %4 {offsets = [0, 0, 0], sizes = [13, 16, 8], strides = [1, 1, 1]} : vector<16x16x8xf32> to vector<13x16x8xf32>
    %7 = tpu.concatenate %5, %6 in 0 : vector<3x16x8xf32>, vector<13x16x8xf32> -> vector<16x16x8xf32>
    %8 = arith.maximumf %4, %7 : vector<16x16x8xf32>
    %cst_3 = arith.constant 0.000000e+00 : f32
    %9 = vector.broadcast %cst_3 : f32 to vector<2x16x8xf32>
    %10 = vector.extract_strided_slice %4 {offsets = [0, 0, 0], sizes = [14, 16, 8], strides = [1, 1, 1]} : vector<16x16x8xf32> to vector<14x16x8xf32>
    %11 = tpu.concatenate %9, %10 in 0 : vector<2x16x8xf32>, vector<14x16x8xf32> -> vector<16x16x8xf32>
    %12 = arith.maximumf %8, %11 : vector<16x16x8xf32>
    %cst_4 = arith.constant 0.000000e+00 : f32
    %13 = vector.broadcast %cst_4 : f32 to vector<1x16x8xf32>
    %14 = vector.extract_strided_slice %4 {offsets = [0, 0, 0], sizes = [15, 16, 8], strides = [1, 1, 1]} : vector<16x16x8xf32> to vector<15x16x8xf32>
    %15 = tpu.concatenate %13, %14 in 0 : vector<1x16x8xf32>, vector<15x16x8xf32> -> vector<16x16x8xf32>
    %16 = arith.maximumf %12, %15 : vector<16x16x8xf32>
    %cst_5 = arith.constant 0.000000e+00 : f32
    %17 = vector.broadcast %cst_5 : f32 to vector<1x16x8xf32>
    %18 = vector.extract_strided_slice %4 {offsets = [1, 0, 0], sizes = [15, 16, 8], strides = [1, 1, 1]} : vector<16x16x8xf32> to vector<15x16x8xf32>
    %19 = tpu.concatenate %18, %17 in 0 : vector<15x16x8xf32>, vector<1x16x8xf32> -> vector<16x16x8xf32>
    %20 = arith.maximumf %16, %19 : vector<16x16x8xf32>
    %cst_6 = arith.constant 0.000000e+00 : f32
    %21 = vector.broadcast %cst_6 : f32 to vector<2x16x8xf32>
    %22 = vector.extract_strided_slice %4 {offsets = [2, 0, 0], sizes = [14, 16, 8], strides = [1, 1, 1]} : vector<16x16x8xf32> to vector<14x16x8xf32>
    %23 = tpu.concatenate %22, %21 in 0 : vector<14x16x8xf32>, vector<2x16x8xf32> -> vector<16x16x8xf32>
    %24 = arith.maximumf %20, %23 : vector<16x16x8xf32>
    %cst_7 = arith.constant 0.000000e+00 : f32
    %25 = vector.broadcast %cst_7 : f32 to vector<3x16x8xf32>
    %26 = vector.extract_strided_slice %4 {offsets = [3, 0, 0], sizes = [13, 16, 8], strides = [1, 1, 1]} : vector<16x16x8xf32> to vector<13x16x8xf32>
    %27 = tpu.concatenate %26, %25 in 0 : vector<13x16x8xf32>, vector<3x16x8xf32> -> vector<16x16x8xf32>
    %28 = arith.maximumf %24, %27 : vector<16x16x8xf32>
    %cst_8 = arith.constant 0.000000e+00 : f32
    %29 = vector.broadcast %cst_8 : f32 to vector<16x3x8xf32>
    %30 = vector.extract_strided_slice %28 {offsets = [0, 0, 0], sizes = [16, 13, 8], strides = [1, 1, 1]} : vector<16x16x8xf32> to vector<16x13x8xf32>
    %31 = tpu.concatenate %29, %30 in 1 : vector<16x3x8xf32>, vector<16x13x8xf32> -> vector<16x16x8xf32>
    %32 = arith.maximumf %28, %31 : vector<16x16x8xf32>
    %cst_9 = arith.constant 0.000000e+00 : f32
    %33 = vector.broadcast %cst_9 : f32 to vector<16x2x8xf32>
    %34 = vector.extract_strided_slice %28 {offsets = [0, 0, 0], sizes = [16, 14, 8], strides = [1, 1, 1]} : vector<16x16x8xf32> to vector<16x14x8xf32>
    %35 = tpu.concatenate %33, %34 in 1 : vector<16x2x8xf32>, vector<16x14x8xf32> -> vector<16x16x8xf32>
    %36 = arith.maximumf %32, %35 : vector<16x16x8xf32>
    %cst_10 = arith.constant 0.000000e+00 : f32
    %37 = vector.broadcast %cst_10 : f32 to vector<16x1x8xf32>
    %38 = vector.extract_strided_slice %28 {offsets = [0, 0, 0], sizes = [16, 15, 8], strides = [1, 1, 1]} : vector<16x16x8xf32> to vector<16x15x8xf32>
    %39 = tpu.concatenate %37, %38 in 1 : vector<16x1x8xf32>, vector<16x15x8xf32> -> vector<16x16x8xf32>
    %40 = arith.maximumf %36, %39 : vector<16x16x8xf32>
    %cst_11 = arith.constant 0.000000e+00 : f32
    %41 = vector.broadcast %cst_11 : f32 to vector<16x1x8xf32>
    %42 = vector.extract_strided_slice %28 {offsets = [0, 1, 0], sizes = [16, 15, 8], strides = [1, 1, 1]} : vector<16x16x8xf32> to vector<16x15x8xf32>
    %43 = tpu.concatenate %42, %41 in 1 : vector<16x15x8xf32>, vector<16x1x8xf32> -> vector<16x16x8xf32>
    %44 = arith.maximumf %40, %43 : vector<16x16x8xf32>
    %cst_12 = arith.constant 0.000000e+00 : f32
    %45 = vector.broadcast %cst_12 : f32 to vector<16x2x8xf32>
    %46 = vector.extract_strided_slice %28 {offsets = [0, 2, 0], sizes = [16, 14, 8], strides = [1, 1, 1]} : vector<16x16x8xf32> to vector<16x14x8xf32>
    %47 = tpu.concatenate %46, %45 in 1 : vector<16x14x8xf32>, vector<16x2x8xf32> -> vector<16x16x8xf32>
    %48 = arith.maximumf %44, %47 : vector<16x16x8xf32>
    %cst_13 = arith.constant 0.000000e+00 : f32
    %49 = vector.broadcast %cst_13 : f32 to vector<16x3x8xf32>
    %50 = vector.extract_strided_slice %28 {offsets = [0, 3, 0], sizes = [16, 13, 8], strides = [1, 1, 1]} : vector<16x16x8xf32> to vector<16x13x8xf32>
    %51 = tpu.concatenate %50, %49 in 1 : vector<16x13x8xf32>, vector<16x3x8xf32> -> vector<16x16x8xf32>
    %52 = arith.maximumf %48, %51 : vector<16x16x8xf32>
    %cst_14 = arith.constant 1.000000e+00 : f32
    %53 = vector.broadcast %cst_14 : f32 to vector<16x16x8xf32>
    %54 = arith.subf %53, %52 : vector<16x16x8xf32>
    %c0_15 = arith.constant 0 : index
    %c0_16 = arith.constant 0 : index
    %c0_17 = arith.constant 0 : index
    %55 = vector.load %arg2[%c0_15, %c0_16, %c0_17] : memref<16x16x8xf32, #tpu.memory_space<vmem>>, vector<16x16x8xf32>
    tpu.vector_store %arg2[%c0_15, %c0_16, %c0_17], %54 {strides = array<i32>} : memref<16x16x8xf32, #tpu.memory_space<vmem>>, vector<16x16x8xf32>,
    return
  }
  func.func @transform_0(%arg0: i32) -> (i32, i32, i32) {
    %c0_i32 = arith.constant 0 : i32
    %c0_i32_0 = arith.constant 0 : i32
    %c0_i32_1 = arith.constant 0 : i32
    return %c0_i32, %c0_i32_0, %arg0 : i32, i32, i32
  }
  func.func @transform_1(%arg0: i32) -> (i32, i32, i32) {
    %c0_i32 = arith.constant 0 : i32
    %c0_i32_0 = arith.constant 0 : i32
    %c0_i32_1 = arith.constant 0 : i32
    return %c0_i32, %c0_i32_0, %arg0 : i32, i32, i32
  }
}

</mosaic_0001>

<llo_original>
// kernel: tpu_custom_call.1
$region0: #{tpu_custom_call.1}
  #allocation0 [shape = 'u32[]', space=smem, size = 0x4, offset = 0x4, fixed_abs, tag = 'smem constant byte address 0x4 - core index']
  #allocation1 [shape = 'u32[144,128]{1,0:T(1,128)}', space=vmem, size = 0x12000, scoped, tag = 'internal scratch']
  %s0 = inlined_call_operand.vmem [shape: f32[16,16,8], index: 0, kind: input, shape index: {}]
  %s1 = inlined_call_operand.vmem [shape: f32[16,16,8], index: 1, kind: output, shape index: {}]
  %s2 = sld [smem:[#allocation0]]
  $region14: #{tpu_custom_call.1} parent=0
    _
  %s4 = ssub.s32 1, %s2
  %s5 = scalar_select 0, %s4, %s2
  // Predicated region
  $region2: #{tpu_custom_call.1} parent=0 // pred_check
    _
  $region3: #{tpu_custom_call.1} parent=0 // pred_check_branch
    %7 = sbr.rel (0) target = $region5
  $region4: #{tpu_custom_call.1} parent=0 // pred_region
    _
  $region5: #{tpu_custom_call.1} parent=0 // pred_fallthru
    _
  %v8 = vld [vmem:[%s0] sm:$0xff]
  %v9 = vld [vmem:[%s0 + $0x8] sm:$0xff]
  %v10 = vld [vmem:[%s0 + $0x10] sm:$0xff]
  %v11 = vld [vmem:[%s0 + $0x18] sm:$0xff]
  %v12 = vld [vmem:[%s0 + $0x20] sm:$0xff]
  %v13 = vld [vmem:[%s0 + $0x28] sm:$0xff]
  %v14 = vld [vmem:[%s0 + $0x30] sm:$0xff]
  %v15 = vld [vmem:[%s0 + $0x38] sm:$0xff]
  %v16 = vld [vmem:[%s0 + $0x40] sm:$0xff]
  %v17 = vld [vmem:[%s0 + $0x48] sm:$0xff]
  %v18 = vld [vmem:[%s0 + $0x50] sm:$0xff]
  %v19 = vld [vmem:[%s0 + $0x58] sm:$0xff]
  %v20 = vld [vmem:[%s0 + $0x60] sm:$0xff]
  %v21 = vld [vmem:[%s0 + $0x68] sm:$0xff]
  %v22 = vld [vmem:[%s0 + $0x70] sm:$0xff]
  %v23 = vld [vmem:[%s0 + $0x78] sm:$0xff]
  %v24 = vld [vmem:[%s0 + $0x80] sm:$0xff]
  %v25 = vld [vmem:[%s0 + $0x88] sm:$0xff]
  %v26 = vld [vmem:[%s0 + $0x90] sm:$0xff]
  %v27 = vld [vmem:[%s0 + $0x98] sm:$0xff]
  %v28 = vld [vmem:[%s0 + $0xa0] sm:$0xff]
  %v29 = vld [vmem:[%s0 + $0xa8] sm:$0xff]
  %v30 = vld [vmem:[%s0 + $0xb0] sm:$0xff]
  %v31 = vld [vmem:[%s0 + $0xb8] sm:$0xff]
  %v32 = vld [vmem:[%s0 + $0xc0] sm:$0xff]
  %v33 = vld [vmem:[%s0 + $0xc8] sm:$0xff]
  %v34 = vld [vmem:[%s0 + $0xd0] sm:$0xff]
  %v35 = vld [vmem:[%s0 + $0xd8] sm:$0xff]
  %v36 = vld [vmem:[%s0 + $0xe0] sm:$0xff]
  %v37 = vld [vmem:[%s0 + $0xe8] sm:$0xff]
  %v38 = vld [vmem:[%s0 + $0xf0] sm:$0xff]
  %v39 = vld [vmem:[%s0 + $0xf8] sm:$0xff]
  %vm40 = vcmp.lt.f32.partialorder %v8, 0.0052244896
  %vm41 = vcmp.lt.f32.partialorder %v9, 0.0052244896
  %vm42 = vcmp.lt.f32.partialorder %v10, 0.0052244896
  %vm43 = vcmp.lt.f32.partialorder %v11, 0.0052244896
  %vm44 = vcmp.lt.f32.partialorder %v12, 0.0052244896
  %vm45 = vcmp.lt.f32.partialorder %v13, 0.0052244896
  %vm46 = vcmp.lt.f32.partialorder %v14, 0.0052244896
  %vm47 = vcmp.lt.f32.partialorder %v15, 0.0052244896
  %vm48 = vcmp.lt.f32.partialorder %v16, 0.0052244896
  %vm49 = vcmp.lt.f32.partialorder %v17, 0.0052244896
  %vm50 = vcmp.lt.f32.partialorder %v18, 0.0052244896
  %vm51 = vcmp.lt.f32.partialorder %v19, 0.0052244896
  %vm52 = vcmp.lt.f32.partialorder %v20, 0.0052244896
  %vm53 = vcmp.lt.f32.partialorder %v21, 0.0052244896
  %vm54 = vcmp.lt.f32.partialorder %v22, 0.0052244896
  %vm55 = vcmp.lt.f32.partialorder %v23, 0.0052244896
  %vm56 = vcmp.lt.f32.partialorder %v24, 0.0052244896
  %vm57 = vcmp.lt.f32.partialorder %v25, 0.0052244896
  %vm58 = vcmp.lt.f32.partialorder %v26, 0.0052244896
  %vm59 = vcmp.lt.f32.partialorder %v27, 0.0052244896
  %vm60 = vcmp.lt.f32.partialorder %v28, 0.0052244896
  %vm61 = vcmp.lt.f32.partialorder %v29, 0.0052244896
  %vm62 = vcmp.lt.f32.partialorder %v30, 0.0052244896
  %vm63 = vcmp.lt.f32.partialorder %v31, 0.0052244896
  %vm64 = vcmp.lt.f32.partialorder %v32, 0.0052244896
  %vm65 = vcmp.lt.f32.partialorder %v33, 0.0052244896
  %vm66 = vcmp.lt.f32.partialorder %v34, 0.0052244896
  %vm67 = vcmp.lt.f32.partialorder %v35, 0.0052244896
  %vm68 = vcmp.lt.f32.partialorder %v36, 0.0052244896
  %vm69 = vcmp.lt.f32.partialorder %v37, 0.0052244896
  %vm70 = vcmp.lt.f32.partialorder %v38, 0.0052244896
  %vm71 = vcmp.lt.f32.partialorder %v39, 0.0052244896
  %v72 = vsel %vm40, 1, 0
  %v73 = vsel %vm41, 1, 0
  %v74 = vsel %vm42, 1, 0
  %v75 = vsel %vm43, 1, 0
  %v76 = vsel %vm44, 1, 0
  %v77 = vsel %vm45, 1, 0
  %v78 = vsel %vm46, 1, 0
  %v79 = vsel %vm47, 1, 0
  %v80 = vsel %vm48, 1, 0
  %v81 = vsel %vm49, 1, 0
  %v82 = vsel %vm50, 1, 0
  %v83 = vsel %vm51, 1, 0
  %v84 = vsel %vm52, 1, 0
  %v85 = vsel %vm53, 1, 0
  %v86 = vsel %vm54, 1, 0
  %v87 = vsel %vm55, 1, 0
  %v88 = vsel %vm56, 1, 0
  %v89 = vsel %vm57, 1, 0
  %v90 = vsel %vm58, 1, 0
  %v91 = vsel %vm59, 1, 0
  %v92 = vsel %vm60, 1, 0
  %v93 = vsel %vm61, 1, 0
  %v94 = vsel %vm62, 1, 0
  %v95 = vsel %vm63, 1, 0
  %v96 = vsel %vm64, 1, 0
  %v97 = vsel %vm65, 1, 0
  %v98 = vsel %vm66, 1, 0
  %v99 = vsel %vm67, 1, 0
  %v100 = vsel %vm68, 1, 0
  %v101 = vsel %vm69, 1, 0
  %v102 = vsel %vm70, 1, 0
  %v103 = vsel %vm71, 1, 0
  %v104 = vcvt.s32.f32 %v72
  %v105 = vcvt.s32.f32 %v73
  %v106 = vcvt.s32.f32 %v74
  %v107 = vcvt.s32.f32 %v75
  %v108 = vcvt.s32.f32 %v76
  %v109 = vcvt.s32.f32 %v77
  %v110 = vcvt.s32.f32 %v78
  %v111 = vcvt.s32.f32 %v79
  %v112 = vcvt.s32.f32 %v80
  %v113 = vcvt.s32.f32 %v81
  %v114 = vcvt.s32.f32 %v82
  %v115 = vcvt.s32.f32 %v83
  %v116 = vcvt.s32.f32 %v84
  %v117 = vcvt.s32.f32 %v85
  %v118 = vcvt.s32.f32 %v86
  %v119 = vcvt.s32.f32 %v87
  %v120 = vcvt.s32.f32 %v88
  %v121 = vcvt.s32.f32 %v89
  %v122 = vcvt.s32.f32 %v90
  %v123 = vcvt.s32.f32 %v91
  %v124 = vcvt.s32.f32 %v92
  %v125 = vcvt.s32.f32 %v93
  %v126 = vcvt.s32.f32 %v94
  %v127 = vcvt.s32.f32 %v95
  %v128 = vcvt.s32.f32 %v96
  %v129 = vcvt.s32.f32 %v97
  %v130 = vcvt.s32.f32 %v98
  %v131 = vcvt.s32.f32 %v99
  %v132 = vcvt.s32.f32 %v100
  %v133 = vcvt.s32.f32 %v101
  %v134 = vcvt.s32.f32 %v102
  %v135 = vcvt.s32.f32 %v103
  %v136 = vmax.f32 %v104, 0.0
  %v137 = vmax.f32 %v105, 0.0
  %v138 = vmax.f32 %v106, 0.0
  %v139 = vmax.f32 %v107, 0.0
  %v140 = vmax.f32 %v108, 0.0
  %v141 = vmax.f32 %v109, 0.0
  %v142 = vmax.f32 %v110, %v104
  %v143 = vmax.f32 %v111, %v105
  %v144 = vmax.f32 %v112, %v106
  %v145 = vmax.f32 %v113, %v107
  %v146 = vmax.f32 %v114, %v108
  %v147 = vmax.f32 %v115, %v109
  %v148 = vmax.f32 %v116, %v110
  %v149 = vmax.f32 %v117, %v111
  %v150 = vmax.f32 %v118, %v112
  %v151 = vmax.f32 %v119, %v113
  %v152 = vmax.f32 %v120, %v114
  %v153 = vmax.f32 %v121, %v115
  %v154 = vmax.f32 %v122, %v116
  %v155 = vmax.f32 %v123, %v117
  %v156 = vmax.f32 %v124, %v118
  %v157 = vmax.f32 %v125, %v119
  %v158 = vmax.f32 %v126, %v120
  %v159 = vmax.f32 %v127, %v121
  %v160 = vmax.f32 %v128, %v122
  %v161 = vmax.f32 %v129, %v123
  %v162 = vmax.f32 %v130, %v124
  %v163 = vmax.f32 %v131, %v125
  %v164 = vmax.f32 %v132, %v126
  %v165 = vmax.f32 %v133, %v127
  %v166 = vmax.f32 %v134, %v128
  %v167 = vmax.f32 %v135, %v129
  %v168 = vmax.f32 %v136, 0.0
  %v169 = vmax.f32 %v137, 0.0
  %v170 = vmax.f32 %v138, 0.0
  %v171 = vmax.f32 %v139, 0.0
  %v172 = vmax.f32 %v140, %v104
  %v173 = vmax.f32 %v141, %v105
  %v174 = vmax.f32 %v142, %v106
  %v175 = vmax.f32 %v143, %v107
  %v176 = vmax.f32 %v144, %v108
  %v177 = vmax.f32 %v145, %v109
  %v178 = vmax.f32 %v146, %v110
  %v179 = vmax.f32 %v147, %v111
  %v180 = vmax.f32 %v148, %v112
  %v181 = vmax.f32 %v149, %v113
  %v182 = vmax.f32 %v150, %v114
  %v183 = vmax.f32 %v151, %v115
  %v184 = vmax.f32 %v152, %v116
  %v185 = vmax.f32 %v153, %v117
  %v186 = vmax.f32 %v154, %v118
  %v187 = vmax.f32 %v155, %v119
  %v188 = vmax.f32 %v156, %v120
  %v189 = vmax.f32 %v157, %v121
  %v190 = vmax.f32 %v158, %v122
  %v191 = vmax.f32 %v159, %v123
  %v192 = vmax.f32 %v160, %v124
  %v193 = vmax.f32 %v161, %v125
  %v194 = vmax.f32 %v162, %v126
  %v195 = vmax.f32 %v163, %v127
  %v196 = vmax.f32 %v164, %v128
  %v197 = vmax.f32 %v165, %v129
  %v198 = vmax.f32 %v166, %v130
  %v199 = vmax.f32 %v167, %v131
  %v200 = vmax.f32 %v168, 0.0
  %v201 = vmax.f32 %v169, 0.0
  %v202 = vmax.f32 %v170, %v104
  %v203 = vmax.f32 %v171, %v105
  %v204 = vmax.f32 %v172, %v106
  %v205 = vmax.f32 %v173, %v107
  %v206 = vmax.f32 %v174, %v108
  %v207 = vmax.f32 %v175, %v109
  %v208 = vmax.f32 %v176, %v110
  %v209 = vmax.f32 %v177, %v111
  %v210 = vmax.f32 %v178, %v112
  %v211 = vmax.f32 %v179, %v113
  %v212 = vmax.f32 %v180, %v114
  %v213 = vmax.f32 %v181, %v115
  %v214 = vmax.f32 %v182, %v116
  %v215 = vmax.f32 %v183, %v117
  %v216 = vmax.f32 %v184, %v118
  %v217 = vmax.f32 %v185, %v119
  %v218 = vmax.f32 %v186, %v120
  %v219 = vmax.f32 %v187, %v121
  %v220 = vmax.f32 %v188, %v122
  %v221 = vmax.f32 %v189, %v123
  %v222 = vmax.f32 %v190, %v124
  %v223 = vmax.f32 %v191, %v125
  %v224 = vmax.f32 %v192, %v126
  %v225 = vmax.f32 %v193, %v127
  %v226 = vmax.f32 %v194, %v128
  %v227 = vmax.f32 %v195, %v129
  %v228 = vmax.f32 %v196, %v130
  %v229 = vmax.f32 %v197, %v131
  %v230 = vmax.f32 %v198, %v132
  %v231 = vmax.f32 %v199, %v133
  %v232 = vmax.f32 %v200, %v106
  %v233 = vmax.f32 %v201, %v107
  %v234 = vmax.f32 %v202, %v108
  %v235 = vmax.f32 %v203, %v109
  %v236 = vmax.f32 %v204, %v110
  %v237 = vmax.f32 %v205, %v111
  %v238 = vmax.f32 %v206, %v112
  %v239 = vmax.f32 %v207, %v113
  %v240 = vmax.f32 %v208, %v114
  %v241 = vmax.f32 %v209, %v115
  %v242 = vmax.f32 %v210, %v116
  %v243 = vmax.f32 %v211, %v117
  %v244 = vmax.f32 %v212, %v118
  %v245 = vmax.f32 %v213, %v119
  %v246 = vmax.f32 %v214, %v120
  %v247 = vmax.f32 %v215, %v121
  %v248 = vmax.f32 %v216, %v122
  %v249 = vmax.f32 %v217, %v123
  %v250 = vmax.f32 %v218, %v124
  %v251 = vmax.f32 %v219, %v125
  %v252 = vmax.f32 %v220, %v126
  %v253 = vmax.f32 %v221, %v127
  %v254 = vmax.f32 %v222, %v128
  %v255 = vmax.f32 %v223, %v129
  %v256 = vmax.f32 %v224, %v130
  %v257 = vmax.f32 %v225, %v131
  %v258 = vmax.f32 %v226, %v132
  %v259 = vmax.f32 %v227, %v133
  %v260 = vmax.f32 %v228, %v134
  %v261 = vmax.f32 %v229, %v135
  %v262 = vmax.f32 %v230, 0.0
  %v263 = vmax.f32 %v231, 0.0
  %v264 = vmax.f32 %v232, %v108
  %v265 = vmax.f32 %v233, %v109
  %v266 = vmax.f32 %v234, %v110
  %v267 = vmax.f32 %v235, %v111
  %v268 = vmax.f32 %v236, %v112
  %v269 = vmax.f32 %v237, %v113
  %v270 = vmax.f32 %v238, %v114
  %v271 = vmax.f32 %v239, %v115
  %v272 = vmax.f32 %v240, %v116
  %v273 = vmax.f32 %v241, %v117
  %v274 = vmax.f32 %v242, %v118
  %v275 = vmax.f32 %v243, %v119
  %v276 = vmax.f32 %v244, %v120
  %v277 = vmax.f32 %v245, %v121
  %v278 = vmax.f32 %v246, %v122
  %v279 = vmax.f32 %v247, %v123
  %v280 = vmax.f32 %v248, %v124
  %v281 = vmax.f32 %v249, %v125
  %v282 = vmax.f32 %v250, %v126
  %v283 = vmax.f32 %v251, %v127
  %v284 = vmax.f32 %v252, %v128
  %v285 = vmax.f32 %v253, %v129
  %v286 = vmax.f32 %v254, %v130
  %v287 = vmax.f32 %v255, %v131
  %v288 = vmax.f32 %v256, %v132
  %v289 = vmax.f32 %v257, %v133
  %v290 = vmax.f32 %v258, %v134
  %v291 = vmax.f32 %v259, %v135
  %v292 = vmax.f32 %v260, 0.0
  %v293 = vmax.f32 %v261, 0.0
  %v294 = vmax.f32 %v262, 0.0
  %v295 = vmax.f32 %v263, 0.0
  %v296 = vmax.f32 %v264, %v110
  %v297 = vmax.f32 %v265, %v111
  %v298 = vmax.f32 %v266, %v112
  %v299 = vmax.f32 %v267, %v113
  %v300 = vmax.f32 %v268, %v114
  %v301 = vmax.f32 %v269, %v115
  %v302 = vmax.f32 %v270, %v116
  %v303 = vmax.f32 %v271, %v117
  %v304 = vmax.f32 %v272, %v118
  %v305 = vmax.f32 %v273, %v119
  %v306 = vmax.f32 %v274, %v120
  %v307 = vmax.f32 %v275, %v121
  %v308 = vmax.f32 %v276, %v122
  %v309 = vmax.f32 %v277, %v123
  %v310 = vmax.f32 %v278, %v124
  %v311 = vmax.f32 %v279, %v125
  %v312 = vmax.f32 %v280, %v126
  %v313 = vmax.f32 %v281, %v127
  %v314 = vmax.f32 %v282, %v128
  %v315 = vmax.f32 %v283, %v129
  %v316 = vmax.f32 %v284, %v130
  %v317 = vmax.f32 %v285, %v131
  %v318 = vmax.f32 %v286, %v132
  %v319 = vmax.f32 %v287, %v133
  %v320 = vmax.f32 %v288, %v134
  %v321 = vmax.f32 %v289, %v135
  %v322 = vmax.f32 %v290, 0.0
  %v323 = vmax.f32 %v291, 0.0
  %v324 = vmax.f32 %v292, 0.0
  %v325 = vmax.f32 %v293, 0.0
  %v326 = vmax.f32 %v294, 0.0
  %v327 = vmax.f32 %v295, 0.0
  %vm360 = vcmask 1042432
  %v361 = vrot.slane %v296, 5
  %v362 = vrot.slane %v297, 5
  %v363 = vsel %vm360, %v361, %v362
  %v364 = vrot.slane %v298, 5
  %v365 = vrot.slane %v299, 5
  %v366 = vsel %vm360, %v364, %v365
  %v367 = vrot.slane %v300, 5
  %v368 = vrot.slane %v301, 5
  %v369 = vsel %vm360, %v367, %v368
  %v370 = vrot.slane %v302, 5
  %v371 = vrot.slane %v303, 5
  %v372 = vsel %vm360, %v370, %v371
  %v373 = vrot.slane %v304, 5
  %v374 = vrot.slane %v305, 5
  %v375 = vsel %vm360, %v373, %v374
  %v376 = vrot.slane %v306, 5
  %v377 = vrot.slane %v307, 5
  %v378 = vsel %vm360, %v376, %v377
  %v379 = vrot.slane %v308, 5
  %v380 = vrot.slane %v309, 5
  %v381 = vsel %vm360, %v379, %v380
  %v382 = vrot.slane %v310, 5
  %v383 = vrot.slane %v311, 5
  %v384 = vsel %vm360, %v382, %v383
  %v385 = vrot.slane %v312, 5
  %v386 = vrot.slane %v313, 5
  %v387 = vsel %vm360, %v385, %v386
  %v388 = vrot.slane %v314, 5
  %v389 = vrot.slane %v315, 5
  %v390 = vsel %vm360, %v388, %v389
  %v391 = vrot.slane %v316, 5
  %v392 = vrot.slane %v317, 5
  %v393 = vsel %vm360, %v391, %v392
  %v394 = vrot.slane %v318, 5
  %v395 = vrot.slane %v319, 5
  %v396 = vsel %vm360, %v394, %v395
  %v397 = vrot.slane %v320, 5
  %v398 = vrot.slane %v321, 5
  %v399 = vsel %vm360, %v397, %v398
  %v400 = vrot.slane %v322, 5
  %v401 = vrot.slane %v323, 5
  %v402 = vsel %vm360, %v400, %v401
  %v403 = vrot.slane %v324, 5
  %v404 = vrot.slane %v325, 5
  %v405 = vsel %vm360, %v403, %v404
  %v406 = vrot.slane %v326, 5
  %v407 = vrot.slane %v327, 5
  %v408 = vsel %vm360, %v406, %v407
  %v441 = vsel %vm360, 0.0, %v361
  %v442 = vsel %vm360, 0.0, %v364
  %v443 = vsel %vm360, 0.0, %v367
  %v444 = vsel %vm360, 0.0, %v370
  %v445 = vsel %vm360, 0.0, %v373
  %v446 = vsel %vm360, 0.0, %v376
  %v447 = vsel %vm360, 0.0, %v379
  %v448 = vsel %vm360, 0.0, %v382
  %v449 = vsel %vm360, 0.0, %v385
  %v450 = vsel %vm360, 0.0, %v388
  %v451 = vsel %vm360, 0.0, %v391
  %v452 = vsel %vm360, 0.0, %v394
  %v453 = vsel %vm360, 0.0, %v397
  %v454 = vsel %vm360, 0.0, %v400
  %v455 = vsel %vm360, 0.0, %v403
  %v456 = vsel %vm360, 0.0, %v406
  %v457 = vmax.f32 %v296, %v441
  %v458 = vmax.f32 %v297, %v363
  %v459 = vmax.f32 %v298, %v442
  %v460 = vmax.f32 %v299, %v366
  %v461 = vmax.f32 %v300, %v443
  %v462 = vmax.f32 %v301, %v369
  %v463 = vmax.f32 %v302, %v444
  %v464 = vmax.f32 %v303, %v372
  %v465 = vmax.f32 %v304, %v445
  %v466 = vmax.f32 %v305, %v375
  %v467 = vmax.f32 %v306, %v446
  %v468 = vmax.f32 %v307, %v378
  %v469 = vmax.f32 %v308, %v447
  %v470 = vmax.f32 %v309, %v381
  %v471 = vmax.f32 %v310, %v448
  %v472 = vmax.f32 %v311, %v384
  %v473 = vmax.f32 %v312, %v449
  %v474 = vmax.f32 %v313, %v387
  %v475 = vmax.f32 %v314, %v450
  %v476 = vmax.f32 %v315, %v390
  %v477 = vmax.f32 %v316, %v451
  %v478 = vmax.f32 %v317, %v393
  %v479 = vmax.f32 %v318, %v452
  %v480 = vmax.f32 %v319, %v396
  %v481 = vmax.f32 %v320, %v453
  %v482 = vmax.f32 %v321, %v399
  %v483 = vmax.f32 %v322, %v454
  %v484 = vmax.f32 %v323, %v402
  %v485 = vmax.f32 %v324, %v455
  %v486 = vmax.f32 %v325, %v405
  %v487 = vmax.f32 %v326, %v456
  %v488 = vmax.f32 %v327, %v408
  %vm489 = vcmask 1041408
  %v490 = vrot.slane %v296, 6
  %v491 = vrot.slane %v297, 6
  %v492 = vsel %vm489, %v490, %v491
  %v493 = vrot.slane %v298, 6
  %v494 = vrot.slane %v299, 6
  %v495 = vsel %vm489, %v493, %v494
  %v496 = vrot.slane %v300, 6
  %v497 = vrot.slane %v301, 6
  %v498 = vsel %vm489, %v496, %v497
  %v499 = vrot.slane %v302, 6
  %v500 = vrot.slane %v303, 6
  %v501 = vsel %vm489, %v499, %v500
  %v502 = vrot.slane %v304, 6
  %v503 = vrot.slane %v305, 6
  %v504 = vsel %vm489, %v502, %v503
  %v505 = vrot.slane %v306, 6
  %v506 = vrot.slane %v307, 6
  %v507 = vsel %vm489, %v505, %v506
  %v508 = vrot.slane %v308, 6
  %v509 = vrot.slane %v309, 6
  %v510 = vsel %vm489, %v508, %v509
  %v511 = vrot.slane %v310, 6
  %v512 = vrot.slane %v311, 6
  %v513 = vsel %vm489, %v511, %v512
  %v514 = vrot.slane %v312, 6
  %v515 = vrot.slane %v313, 6
  %v516 = vsel %vm489, %v514, %v515
  %v517 = vrot.slane %v314, 6
  %v518 = vrot.slane %v315, 6
  %v519 = vsel %vm489, %v517, %v518
  %v520 = vrot.slane %v316, 6
  %v521 = vrot.slane %v317, 6
  %v522 = vsel %vm489, %v520, %v521
  %v523 = vrot.slane %v318, 6
  %v524 = vrot.slane %v319, 6
  %v525 = vsel %vm489, %v523, %v524
  %v526 = vrot.slane %v320, 6
  %v527 = vrot.slane %v321, 6
  %v528 = vsel %vm489, %v526, %v527
  %v529 = vrot.slane %v322, 6
  %v530 = vrot.slane %v323, 6
  %v531 = vsel %vm489, %v529, %v530
  %v532 = vrot.slane %v324, 6
  %v533 = vrot.slane %v325, 6
  %v534 = vsel %vm489, %v532, %v533
  %v535 = vrot.slane %v326, 6
  %v536 = vrot.slane %v327, 6
  %v537 = vsel %vm489, %v535, %v536
  %v570 = vsel %vm489, 0.0, %v490
  %v571 = vsel %vm489, 0.0, %v493
  %v572 = vsel %vm489, 0.0, %v496
  %v573 = vsel %vm489, 0.0, %v499
  %v574 = vsel %vm489, 0.0, %v502
  %v575 = vsel %vm489, 0.0, %v505
  %v576 = vsel %vm489, 0.0, %v508
  %v577 = vsel %vm489, 0.0, %v511
  %v578 = vsel %vm489, 0.0, %v514
  %v579 = vsel %vm489, 0.0, %v517
  %v580 = vsel %vm489, 0.0, %v520
  %v581 = vsel %vm489, 0.0, %v523
  %v582 = vsel %vm489, 0.0, %v526
  %v583 = vsel %vm489, 0.0, %v529
  %v584 = vsel %vm489, 0.0, %v532
  %v585 = vsel %vm489, 0.0, %v535
  %v586 = vmax.f32 %v457, %v570
  %v587 = vmax.f32 %v458, %v492
  %v588 = vmax.f32 %v459, %v571
  %v589 = vmax.f32 %v460, %v495
  %v590 = vmax.f32 %v461, %v572
  %v591 = vmax.f32 %v462, %v498
  %v592 = vmax.f32 %v463, %v573
  %v593 = vmax.f32 %v464, %v501
  %v594 = vmax.f32 %v465, %v574
  %v595 = vmax.f32 %v466, %v504
  %v596 = vmax.f32 %v467, %v575
  %v597 = vmax.f32 %v468, %v507
  %v598 = vmax.f32 %v469, %v576
  %v599 = vmax.f32 %v470, %v510
  %v600 = vmax.f32 %v471, %v577
  %v601 = vmax.f32 %v472, %v513
  %v602 = vmax.f32 %v473, %v578
  %v603 = vmax.f32 %v474, %v516
  %v604 = vmax.f32 %v475, %v579
  %v605 = vmax.f32 %v476, %v519
  %v606 = vmax.f32 %v477, %v580
  %v607 = vmax.f32 %v478, %v522
  %v608 = vmax.f32 %v479, %v581
  %v609 = vmax.f32 %v480, %v525
  %v610 = vmax.f32 %v481, %v582
  %v611 = vmax.f32 %v482, %v528
  %v612 = vmax.f32 %v483, %v583
  %v613 = vmax.f32 %v484, %v531
  %v614 = vmax.f32 %v485, %v584
  %v615 = vmax.f32 %v486, %v534
  %v616 = vmax.f32 %v487, %v585
  %v617 = vmax.f32 %v488, %v537
  %vm618 = vcmask 1040384
  %v619 = vrot.slane %v296, 7
  %v620 = vrot.slane %v297, 7
  %v621 = vsel %vm618, %v619, %v620
  %v622 = vrot.slane %v298, 7
  %v623 = vrot.slane %v299, 7
  %v624 = vsel %vm618, %v622, %v623
  %v625 = vrot.slane %v300, 7
  %v626 = vrot.slane %v301, 7
  %v627 = vsel %vm618, %v625, %v626
  %v628 = vrot.slane %v302, 7
  %v629 = vrot.slane %v303, 7
  %v630 = vsel %vm618, %v628, %v629
  %v631 = vrot.slane %v304, 7
  %v632 = vrot.slane %v305, 7
  %v633 = vsel %vm618, %v631, %v632
  %v634 = vrot.slane %v306, 7
  %v635 = vrot.slane %v307, 7
  %v636 = vsel %vm618, %v634, %v635
  %v637 = vrot.slane %v308, 7
  %v638 = vrot.slane %v309, 7
  %v639 = vsel %vm618, %v637, %v638
  %v640 = vrot.slane %v310, 7
  %v641 = vrot.slane %v311, 7
  %v642 = vsel %vm618, %v640, %v641
  %v643 = vrot.slane %v312, 7
  %v644 = vrot.slane %v313, 7
  %v645 = vsel %vm618, %v643, %v644
  %v646 = vrot.slane %v314, 7
  %v647 = vrot.slane %v315, 7
  %v648 = vsel %vm618, %v646, %v647
  %v649 = vrot.slane %v316, 7
  %v650 = vrot.slane %v317, 7
  %v651 = vsel %vm618, %v649, %v650
  %v652 = vrot.slane %v318, 7
  %v653 = vrot.slane %v319, 7
  %v654 = vsel %vm618, %v652, %v653
  %v655 = vrot.slane %v320, 7
  %v656 = vrot.slane %v321, 7
  %v657 = vsel %vm618, %v655, %v656
  %v658 = vrot.slane %v322, 7
  %v659 = vrot.slane %v323, 7
  %v660 = vsel %vm618, %v658, %v659
  %v661 = vrot.slane %v324, 7
  %v662 = vrot.slane %v325, 7
  %v663 = vsel %vm618, %v661, %v662
  %v664 = vrot.slane %v326, 7
  %v665 = vrot.slane %v327, 7
  %v666 = vsel %vm618, %v664, %v665
  %v699 = vsel %vm618, 0.0, %v619
  %v700 = vsel %vm618, 0.0, %v622
  %v701 = vsel %vm618, 0.0, %v625
  %v702 = vsel %vm618, 0.0, %v628
  %v703 = vsel %vm618, 0.0, %v631
  %v704 = vsel %vm618, 0.0, %v634
  %v705 = vsel %vm618, 0.0, %v637
  %v706 = vsel %vm618, 0.0, %v640
  %v707 = vsel %vm618, 0.0, %v643
  %v708 = vsel %vm618, 0.0, %v646
  %v709 = vsel %vm618, 0.0, %v649
  %v710 = vsel %vm618, 0.0, %v652
  %v711 = vsel %vm618, 0.0, %v655
  %v712 = vsel %vm618, 0.0, %v658
  %v713 = vsel %vm618, 0.0, %v661
  %v714 = vsel %vm618, 0.0, %v664
  %v715 = vmax.f32 %v586, %v699
  %v716 = vmax.f32 %v587, %v621
  %v717 = vmax.f32 %v588, %v700
  %v718 = vmax.f32 %v589, %v624
  %v719 = vmax.f32 %v590, %v701
  %v720 = vmax.f32 %v591, %v627
  %v721 = vmax.f32 %v592, %v702
  %v722 = vmax.f32 %v593, %v630
  %v723 = vmax.f32 %v594, %v703
  %v724 = vmax.f32 %v595, %v633
  %v725 = vmax.f32 %v596, %v704
  %v726 = vmax.f32 %v597, %v636
  %v727 = vmax.f32 %v598, %v705
  %v728 = vmax.f32 %v599, %v639
  %v729 = vmax.f32 %v600, %v706
  %v730 = vmax.f32 %v601, %v642
  %v731 = vmax.f32 %v602, %v707
  %v732 = vmax.f32 %v603, %v645
  %v733 = vmax.f32 %v604, %v708
  %v734 = vmax.f32 %v605, %v648
  %v735 = vmax.f32 %v606, %v709
  %v736 = vmax.f32 %v607, %v651
  %v737 = vmax.f32 %v608, %v710
  %v738 = vmax.f32 %v609, %v654
  %v739 = vmax.f32 %v610, %v711
  %v740 = vmax.f32 %v611, %v657
  %v741 = vmax.f32 %v612, %v712
  %v742 = vmax.f32 %v613, %v660
  %v743 = vmax.f32 %v614, %v713
  %v744 = vmax.f32 %v615, %v663
  %v745 = vmax.f32 %v616, %v714
  %v746 = vmax.f32 %v617, %v666
  %vm747 = vcmask 1046528
  %v748 = vrot.slane %v296, 1
  %v749 = vrot.slane %v297, 1
  %v750 = vsel %vm747, %v748, %v749
  %v751 = vrot.slane %v298, 1
  %v752 = vrot.slane %v299, 1
  %v753 = vsel %vm747, %v751, %v752
  %v754 = vrot.slane %v300, 1
  %v755 = vrot.slane %v301, 1
  %v756 = vsel %vm747, %v754, %v755
  %v757 = vrot.slane %v302, 1
  %v758 = vrot.slane %v303, 1
  %v759 = vsel %vm747, %v757, %v758
  %v760 = vrot.slane %v304, 1
  %v761 = vrot.slane %v305, 1
  %v762 = vsel %vm747, %v760, %v761
  %v763 = vrot.slane %v306, 1
  %v764 = vrot.slane %v307, 1
  %v765 = vsel %vm747, %v763, %v764
  %v766 = vrot.slane %v308, 1
  %v767 = vrot.slane %v309, 1
  %v768 = vsel %vm747, %v766, %v767
  %v769 = vrot.slane %v310, 1
  %v770 = vrot.slane %v311, 1
  %v771 = vsel %vm747, %v769, %v770
  %v772 = vrot.slane %v312, 1
  %v773 = vrot.slane %v313, 1
  %v774 = vsel %vm747, %v772, %v773
  %v775 = vrot.slane %v314, 1
  %v776 = vrot.slane %v315, 1
  %v777 = vsel %vm747, %v775, %v776
  %v778 = vrot.slane %v316, 1
  %v779 = vrot.slane %v317, 1
  %v780 = vsel %vm747, %v778, %v779
  %v781 = vrot.slane %v318, 1
  %v782 = vrot.slane %v319, 1
  %v783 = vsel %vm747, %v781, %v782
  %v784 = vrot.slane %v320, 1
  %v785 = vrot.slane %v321, 1
  %v786 = vsel %vm747, %v784, %v785
  %v787 = vrot.slane %v322, 1
  %v788 = vrot.slane %v323, 1
  %v789 = vsel %vm747, %v787, %v788
  %v790 = vrot.slane %v324, 1
  %v791 = vrot.slane %v325, 1
  %v792 = vsel %vm747, %v790, %v791
  %v793 = vrot.slane %v326, 1
  %v794 = vrot.slane %v327, 1
  %v795 = vsel %vm747, %v793, %v794
  %v828 = vsel %vm747, %v749, 0.0
  %v829 = vsel %vm747, %v752, 0.0
  %v830 = vsel %vm747, %v755, 0.0
  %v831 = vsel %vm747, %v758, 0.0
  %v832 = vsel %vm747, %v761, 0.0
  %v833 = vsel %vm747, %v764, 0.0
  %v834 = vsel %vm747, %v767, 0.0
  %v835 = vsel %vm747, %v770, 0.0
  %v836 = vsel %vm747, %v773, 0.0
  %v837 = vsel %vm747, %v776, 0.0
  %v838 = vsel %vm747, %v779, 0.0
  %v839 = vsel %vm747, %v782, 0.0
  %v840 = vsel %vm747, %v785, 0.0
  %v841 = vsel %vm747, %v788, 0.0
  %v842 = vsel %vm747, %v791, 0.0
  %v843 = vsel %vm747, %v794, 0.0
  %v844 = vmax.f32 %v715, %v750
  %v845 = vmax.f32 %v716, %v828
  %v846 = vmax.f32 %v717, %v753
  %v847 = vmax.f32 %v718, %v829
  %v848 = vmax.f32 %v719, %v756
  %v849 = vmax.f32 %v720, %v830
  %v850 = vmax.f32 %v721, %v759
  %v851 = vmax.f32 %v722, %v831
  %v852 = vmax.f32 %v723, %v762
  %v853 = vmax.f32 %v724, %v832
  %v854 = vmax.f32 %v725, %v765
  %v855 = vmax.f32 %v726, %v833
  %v856 = vmax.f32 %v727, %v768
  %v857 = vmax.f32 %v728, %v834
  %v858 = vmax.f32 %v729, %v771
  %v859 = vmax.f32 %v730, %v835
  %v860 = vmax.f32 %v731, %v774
  %v861 = vmax.f32 %v732, %v836
  %v862 = vmax.f32 %v733, %v777
  %v863 = vmax.f32 %v734, %v837
  %v864 = vmax.f32 %v735, %v780
  %v865 = vmax.f32 %v736, %v838
  %v866 = vmax.f32 %v737, %v783
  %v867 = vmax.f32 %v738, %v839
  %v868 = vmax.f32 %v739, %v786
  %v869 = vmax.f32 %v740, %v840
  %v870 = vmax.f32 %v741, %v789
  %v871 = vmax.f32 %v742, %v841
  %v872 = vmax.f32 %v743, %v792
  %v873 = vmax.f32 %v744, %v842
  %v874 = vmax.f32 %v745, %v795
  %v875 = vmax.f32 %v746, %v843
  %vm876 = vcmask 1045504
  %v877 = vrot.slane %v296, 2
  %v878 = vrot.slane %v297, 2
  %v879 = vsel %vm876, %v877, %v878
  %v880 = vrot.slane %v298, 2
  %v881 = vrot.slane %v299, 2
  %v882 = vsel %vm876, %v880, %v881
  %v883 = vrot.slane %v300, 2
  %v884 = vrot.slane %v301, 2
  %v885 = vsel %vm876, %v883, %v884
  %v886 = vrot.slane %v302, 2
  %v887 = vrot.slane %v303, 2
  %v888 = vsel %vm876, %v886, %v887
  %v889 = vrot.slane %v304, 2
  %v890 = vrot.slane %v305, 2
  %v891 = vsel %vm876, %v889, %v890
  %v892 = vrot.slane %v306, 2
  %v893 = vrot.slane %v307, 2
  %v894 = vsel %vm876, %v892, %v893
  %v895 = vrot.slane %v308, 2
  %v896 = vrot.slane %v309, 2
  %v897 = vsel %vm876, %v895, %v896
  %v898 = vrot.slane %v310, 2
  %v899 = vrot.slane %v311, 2
  %v900 = vsel %vm876, %v898, %v899
  %v901 = vrot.slane %v312, 2
  %v902 = vrot.slane %v313, 2
  %v903 = vsel %vm876, %v901, %v902
  %v904 = vrot.slane %v314, 2
  %v905 = vrot.slane %v315, 2
  %v906 = vsel %vm876, %v904, %v905
  %v907 = vrot.slane %v316, 2
  %v908 = vrot.slane %v317, 2
  %v909 = vsel %vm876, %v907, %v908
  %v910 = vrot.slane %v318, 2
  %v911 = vrot.slane %v319, 2
  %v912 = vsel %vm876, %v910, %v911
  %v913 = vrot.slane %v320, 2
  %v914 = vrot.slane %v321, 2
  %v915 = vsel %vm876, %v913, %v914
  %v916 = vrot.slane %v322, 2
  %v917 = vrot.slane %v323, 2
  %v918 = vsel %vm876, %v916, %v917
  %v919 = vrot.slane %v324, 2
  %v920 = vrot.slane %v325, 2
  %v921 = vsel %vm876, %v919, %v920
  %v922 = vrot.slane %v326, 2
  %v923 = vrot.slane %v327, 2
  %v924 = vsel %vm876, %v922, %v923
  %v957 = vsel %vm876, %v878, 0.0
  %v958 = vsel %vm876, %v881, 0.0
  %v959 = vsel %vm876, %v884, 0.0
  %v960 = vsel %vm876, %v887, 0.0
  %v961 = vsel %vm876, %v890, 0.0
  %v962 = vsel %vm876, %v893, 0.0
  %v963 = vsel %vm876, %v896, 0.0
  %v964 = vsel %vm876, %v899, 0.0
  %v965 = vsel %vm876, %v902, 0.0
  %v966 = vsel %vm876, %v905, 0.0
  %v967 = vsel %vm876, %v908, 0.0
  %v968 = vsel %vm876, %v911, 0.0
  %v969 = vsel %vm876, %v914, 0.0
  %v970 = vsel %vm876, %v917, 0.0
  %v971 = vsel %vm876, %v920, 0.0
  %v972 = vsel %vm876, %v923, 0.0
  %v973 = vmax.f32 %v844, %v879
  %v974 = vmax.f32 %v845, %v957
  %v975 = vmax.f32 %v846, %v882
  %v976 = vmax.f32 %v847, %v958
  %v977 = vmax.f32 %v848, %v885
  %v978 = vmax.f32 %v849, %v959
  %v979 = vmax.f32 %v850, %v888
  %v980 = vmax.f32 %v851, %v960
  %v981 = vmax.f32 %v852, %v891
  %v982 = vmax.f32 %v853, %v961
  %v983 = vmax.f32 %v854, %v894
  %v984 = vmax.f32 %v855, %v962
  %v985 = vmax.f32 %v856, %v897
  %v986 = vmax.f32 %v857, %v963
  %v987 = vmax.f32 %v858, %v900
  %v988 = vmax.f32 %v859, %v964
  %v989 = vmax.f32 %v860, %v903
  %v990 = vmax.f32 %v861, %v965
  %v991 = vmax.f32 %v862, %v906
  %v992 = vmax.f32 %v863, %v966
  %v993 = vmax.f32 %v864, %v909
  %v994 = vmax.f32 %v865, %v967
  %v995 = vmax.f32 %v866, %v912
  %v996 = vmax.f32 %v867, %v968
  %v997 = vmax.f32 %v868, %v915
  %v998 = vmax.f32 %v869, %v969
  %v999 = vmax.f32 %v870, %v918
  %v1000 = vmax.f32 %v871, %v970
  %v1001 = vmax.f32 %v872, %v921
  %v1002 = vmax.f32 %v873, %v971
  %v1003 = vmax.f32 %v874, %v924
  %v1004 = vmax.f32 %v875, %v972
  %vm1005 = vcmask 1044480
  %v1006 = vrot.slane %v296, 3
  %v1007 = vrot.slane %v297, 3
  %v1008 = vsel %vm1005, %v1006, %v1007
  %v1009 = vrot.slane %v298, 3
  %v1010 = vrot.slane %v299, 3
  %v1011 = vsel %vm1005, %v1009, %v1010
  %v1012 = vrot.slane %v300, 3
  %v1013 = vrot.slane %v301, 3
  %v1014 = vsel %vm1005, %v1012, %v1013
  %v1015 = vrot.slane %v302, 3
  %v1016 = vrot.slane %v303, 3
  %v1017 = vsel %vm1005, %v1015, %v1016
  %v1018 = vrot.slane %v304, 3
  %v1019 = vrot.slane %v305, 3
  %v1020 = vsel %vm1005, %v1018, %v1019
  %v1021 = vrot.slane %v306, 3
  %v1022 = vrot.slane %v307, 3
  %v1023 = vsel %vm1005, %v1021, %v1022
  %v1024 = vrot.slane %v308, 3
  %v1025 = vrot.slane %v309, 3
  %v1026 = vsel %vm1005, %v1024, %v1025
  %v1027 = vrot.slane %v310, 3
  %v1028 = vrot.slane %v311, 3
  %v1029 = vsel %vm1005, %v1027, %v1028
  %v1030 = vrot.slane %v312, 3
  %v1031 = vrot.slane %v313, 3
  %v1032 = vsel %vm1005, %v1030, %v1031
  %v1033 = vrot.slane %v314, 3
  %v1034 = vrot.slane %v315, 3
  %v1035 = vsel %vm1005, %v1033, %v1034
  %v1036 = vrot.slane %v316, 3
  %v1037 = vrot.slane %v317, 3
  %v1038 = vsel %vm1005, %v1036, %v1037
  %v1039 = vrot.slane %v318, 3
  %v1040 = vrot.slane %v319, 3
  %v1041 = vsel %vm1005, %v1039, %v1040
  %v1042 = vrot.slane %v320, 3
  %v1043 = vrot.slane %v321, 3
  %v1044 = vsel %vm1005, %v1042, %v1043
  %v1045 = vrot.slane %v322, 3
  %v1046 = vrot.slane %v323, 3
  %v1047 = vsel %vm1005, %v1045, %v1046
  %v1048 = vrot.slane %v324, 3
  %v1049 = vrot.slane %v325, 3
  %v1050 = vsel %vm1005, %v1048, %v1049
  %v1051 = vrot.slane %v326, 3
  %v1052 = vrot.slane %v327, 3
  %v1053 = vsel %vm1005, %v1051, %v1052
  %v1086 = vsel %vm1005, %v1007, 0.0
  %v1087 = vsel %vm1005, %v1010, 0.0
  %v1088 = vsel %vm1005, %v1013, 0.0
  %v1089 = vsel %vm1005, %v1016, 0.0
  %v1090 = vsel %vm1005, %v1019, 0.0
  %v1091 = vsel %vm1005, %v1022, 0.0
  %v1092 = vsel %vm1005, %v1025, 0.0
  %v1093 = vsel %vm1005, %v1028, 0.0
  %v1094 = vsel %vm1005, %v1031, 0.0
  %v1095 = vsel %vm1005, %v1034, 0.0
  %v1096 = vsel %vm1005, %v1037, 0.0
  %v1097 = vsel %vm1005, %v1040, 0.0
  %v1098 = vsel %vm1005, %v1043, 0.0
  %v1099 = vsel %vm1005, %v1046, 0.0
  %v1100 = vsel %vm1005, %v1049, 0.0
  %v1101 = vsel %vm1005, %v1052, 0.0
  %v1102 = vmax.f32 %v973, %v1008
  %v1103 = vmax.f32 %v974, %v1086
  %v1104 = vmax.f32 %v975, %v1011
  %v1105 = vmax.f32 %v976, %v1087
  %v1106 = vmax.f32 %v977, %v1014
  %v1107 = vmax.f32 %v978, %v1088
  %v1108 = vmax.f32 %v979, %v1017
  %v1109 = vmax.f32 %v980, %v1089
  %v1110 = vmax.f32 %v981, %v1020
  %v1111 = vmax.f32 %v982, %v1090
  %v1112 = vmax.f32 %v983, %v1023
  %v1113 = vmax.f32 %v984, %v1091
  %v1114 = vmax.f32 %v985, %v1026
  %v1115 = vmax.f32 %v986, %v1092
  %v1116 = vmax.f32 %v987, %v1029
  %v1117 = vmax.f32 %v988, %v1093
  %v1118 = vmax.f32 %v989, %v1032
  %v1119 = vmax.f32 %v990, %v1094
  %v1120 = vmax.f32 %v991, %v1035
  %v1121 = vmax.f32 %v992, %v1095
  %v1122 = vmax.f32 %v993, %v1038
  %v1123 = vmax.f32 %v994, %v1096
  %v1124 = vmax.f32 %v995, %v1041
  %v1125 = vmax.f32 %v996, %v1097
  %v1126 = vmax.f32 %v997, %v1044
  %v1127 = vmax.f32 %v998, %v1098
  %v1128 = vmax.f32 %v999, %v1047
  %v1129 = vmax.f32 %v1000, %v1099
  %v1130 = vmax.f32 %v1001, %v1050
  %v1131 = vmax.f32 %v1002, %v1100
  %v1132 = vmax.f32 %v1003, %v1053
  %v1133 = vmax.f32 %v1004, %v1101
  %v1134 = vsub.f32 1.0, %v1102
  %v1135 = vsub.f32 1.0, %v1103
  %v1136 = vsub.f32 1.0, %v1104
  %v1137 = vsub.f32 1.0, %v1105
  %v1138 = vsub.f32 1.0, %v1106
  %v1139 = vsub.f32 1.0, %v1107
  %v1140 = vsub.f32 1.0, %v1108
  %v1141 = vsub.f32 1.0, %v1109
  %v1142 = vsub.f32 1.0, %v1110
  %v1143 = vsub.f32 1.0, %v1111
  %v1144 = vsub.f32 1.0, %v1112
  %v1145 = vsub.f32 1.0, %v1113
  %v1146 = vsub.f32 1.0, %v1114
  %v1147 = vsub.f32 1.0, %v1115
  %v1148 = vsub.f32 1.0, %v1116
  %v1149 = vsub.f32 1.0, %v1117
  %v1150 = vsub.f32 1.0, %v1118
  %v1151 = vsub.f32 1.0, %v1119
  %v1152 = vsub.f32 1.0, %v1120
  %v1153 = vsub.f32 1.0, %v1121
  %v1154 = vsub.f32 1.0, %v1122
  %v1155 = vsub.f32 1.0, %v1123
  %v1156 = vsub.f32 1.0, %v1124
  %v1157 = vsub.f32 1.0, %v1125
  %v1158 = vsub.f32 1.0, %v1126
  %v1159 = vsub.f32 1.0, %v1127
  %v1160 = vsub.f32 1.0, %v1128
  %v1161 = vsub.f32 1.0, %v1129
  %v1162 = vsub.f32 1.0, %v1130
  %v1163 = vsub.f32 1.0, %v1131
  %v1164 = vsub.f32 1.0, %v1132
  %v1165 = vsub.f32 1.0, %v1133
  %vm1166 = vcmask 64512
  %1167 = vst.msk [vmem:[%s1] sm:$0xff] %vm1166, %v1134
  %1168 = vst.msk [vmem:[%s1 + $0x8] sm:$0xff] %vm1166, %v1135
  %1169 = vst.msk [vmem:[%s1 + $0x10] sm:$0xff] %vm1166, %v1136
  %1170 = vst.msk [vmem:[%s1 + $0x18] sm:$0xff] %vm1166, %v1137
  %1171 = vst.msk [vmem:[%s1 + $0x20] sm:$0xff] %vm1166, %v1138
  %1172 = vst.msk [vmem:[%s1 + $0x28] sm:$0xff] %vm1166, %v1139
  %1173 = vst.msk [vmem:[%s1 + $0x30] sm:$0xff] %vm1166, %v1140
  %1174 = vst.msk [vmem:[%s1 + $0x38] sm:$0xff] %vm1166, %v1141
  %1175 = vst.msk [vmem:[%s1 + $0x40] sm:$0xff] %vm1166, %v1142
  %1176 = vst.msk [vmem:[%s1 + $0x48] sm:$0xff] %vm1166, %v1143
  %1177 = vst.msk [vmem:[%s1 + $0x50] sm:$0xff] %vm1166, %v1144
  %1178 = vst.msk [vmem:[%s1 + $0x58] sm:$0xff] %vm1166, %v1145
  %1179 = vst.msk [vmem:[%s1 + $0x60] sm:$0xff] %vm1166, %v1146
  %1180 = vst.msk [vmem:[%s1 + $0x68] sm:$0xff] %vm1166, %v1147
  %1181 = vst.msk [vmem:[%s1 + $0x70] sm:$0xff] %vm1166, %v1148
  %1182 = vst.msk [vmem:[%s1 + $0x78] sm:$0xff] %vm1166, %v1149
  %1183 = vst.msk [vmem:[%s1 + $0x80] sm:$0xff] %vm1166, %v1150
  %1184 = vst.msk [vmem:[%s1 + $0x88] sm:$0xff] %vm1166, %v1151
  %1185 = vst.msk [vmem:[%s1 + $0x90] sm:$0xff] %vm1166, %v1152
  %1186 = vst.msk [vmem:[%s1 + $0x98] sm:$0xff] %vm1166, %v1153
  %1187 = vst.msk [vmem:[%s1 + $0xa0] sm:$0xff] %vm1166, %v1154
  %1188 = vst.msk [vmem:[%s1 + $0xa8] sm:$0xff] %vm1166, %v1155
  %1189 = vst.msk [vmem:[%s1 + $0xb0] sm:$0xff] %vm1166, %v1156
  %1190 = vst.msk [vmem:[%s1 + $0xb8] sm:$0xff] %vm1166, %v1157
  %1191 = vst.msk [vmem:[%s1 + $0xc0] sm:$0xff] %vm1166, %v1158
  %1192 = vst.msk [vmem:[%s1 + $0xc8] sm:$0xff] %vm1166, %v1159
  %1193 = vst.msk [vmem:[%s1 + $0xd0] sm:$0xff] %vm1166, %v1160
  %1194 = vst.msk [vmem:[%s1 + $0xd8] sm:$0xff] %vm1166, %v1161
  %1195 = vst.msk [vmem:[%s1 + $0xe0] sm:$0xff] %vm1166, %v1162
  %1196 = vst.msk [vmem:[%s1 + $0xe8] sm:$0xff] %vm1166, %v1163
  %1197 = vst.msk [vmem:[%s1 + $0xf0] sm:$0xff] %vm1166, %v1164
  %1198 = vst.msk [vmem:[%s1 + $0xf8] sm:$0xff] %vm1166, %v1165
  // Predicated region
  $region6: #{tpu_custom_call.1} parent=0 // pred_check
    _
  $region7: #{tpu_custom_call.1} parent=0 // pred_check_branch
    %1200 = sbr.rel (0) target = $region9
  $region8: #{tpu_custom_call.1} parent=0 // pred_region
    _
  $region9: #{tpu_custom_call.1} parent=0 // pred_fallthru
    _
  // Predicated region
  $region10: #{tpu_custom_call.1} parent=0 // pred_check
    _
  $region11: #{tpu_custom_call.1} parent=0 // pred_check_branch
    %1202 = sbr.rel (0) target = $region13
  $region12: #{tpu_custom_call.1} parent=0 // pred_region
    _
  $region13: #{tpu_custom_call.1} parent=0 // pred_fallthru
    _

</llo_original>
